<compile_context>
chip_gen: v7x
topology: tpu7x:2x2x1
jax: 0.10.0
libtpu: 0.0.40
codegen_flags: <defaults>
</compile_context>

<pallas_src>
import functools

import jax
import jax.numpy as jnp
from jax.experimental import pallas as pl
from jax.experimental.pallas import tpu as pltpu


def _round_up(x, m):
    return (x + m - 1) // m * m


# Cap on batch-tile rows: keeps the (TB, 1) row-sum intermediate (lane-padded
# to TB*512 bytes in VMEM) and the (TB,1)->(1,TB) relayout small while per-step
# input DMA is already multi-MiB (>= ~3 MiB at D=32 f32), i.e. on the HBM
# roofline plateau on every generation.
_TB_CAP = 8192


def _vmem_budget():
    """Return (vmem_limit_bytes, tile_budget_bytes), generation-aware."""
    cap = 0
    try:
        cap = int(getattr(pltpu.get_tpu_info(), "vmem_capacity_bytes", 0) or 0)
    except Exception:
        cap = 0
    if cap <= 0:
        cap = 64 * 1024 * 1024            # conservative fallback: v7x physical VMEM
    # Scoped limit: ~3/4 of physical, capped at 96 MiB (v5e/v6e have 128 MiB,
    # v7x only 64 MiB).  Tile budget ~2/3 of the limit leaves headroom for
    # Mosaic-internal scratch and the lane-padded row-sum temporaries.
    vmem_limit = min(96 * 1024 * 1024, (cap * 3) // 4)
    budget = (vmem_limit * 2) // 3
    return int(vmem_limit), int(budget)


def _pick_tiles(B, D, itemsize, budget_bytes):
    """Choose (TB, TD) batch/feature tile sizes.

    VMEM cost model per grid step: 3 inputs x 2 pipeline buffers x itemsize
    plus ~16 B/elem headroom for the f32 upcast / elementwise temporaries.
    Guarantees: TB is a multiple of 8 when it is the only batch tile, a
    multiple of 128 otherwise; TD is D or a multiple of 128.
    """
    per_elem = 3 * 2 * itemsize + 16
    max_elems = max(budget_bytes // per_elem, 128 * 128)
    B8 = _round_up(B, 8)

    rows_full_d = max_elems // max(D, 1)
    if rows_full_d >= B8 and B8 <= _TB_CAP:
        return B8, D                                        # single tile, full D
    if rows_full_d >= 128:
        return min(_TB_CAP, rows_full_d // 128 * 128), D    # tile batch only

    # D so large that even 128 full-D rows overflow the budget: tile D too,
    # keeping TB >= 256-512 rows so per-step DMA bytes stay large.
    tb = B8 if B8 <= 512 else 512
    td = max(128, (max_elems // tb) // 128 * 128)
    td = min(td, _round_up(D, 128))
    for cand in range(td, 127, -128):       # prefer a TD that divides D: no
        if D % cand == 0:                   # ragged-column mask gets compiled in
            return tb, cand
    return tb, td


def _triplet_kernel(a_ref, p_ref, n_ref, o_ref, *, margin, d_size, td, nd, d_ragged):
    # Upcast so bf16 inputs still compute / accumulate in f32.
    a = a_ref[...].astype(jnp.float32)
    p = p_ref[...].astype(jnp.float32)
    n = n_ref[...].astype(jnp.float32)
    ap = a - p
    an = a - n
    e = ap * ap - an * an                                     # (TB, TD)

    j = pl.program_id(1)
    if d_ragged:
        # Last D block extends past D: zero out-of-range columns so they do
        # not pollute valid rows' sums (only compiled when D % TD != 0).
        col = j * td + jax.lax.broadcasted_iota(jnp.int32, (1, e.shape[1]), 1)
        e = jnp.where(col < d_size, e, 0.0)

    # (TB, 1) -> (1, TB) relayout so the output store is lane-dense (unmasked
    # vst).  For lane-dense TD (>=128) this is hidden under the per-step DMA;
    # for small D on v7x the lane-underfilled VPU work plus this relayout may
    # be partially exposed -- packing rows lane-dense in the wrapper (e.g.
    # (B,32) f32 viewed as (B/4,128) + in-lane segmented reduce) is the next
    # step if a bundle dump shows vld/DMA is not the saturated slot.
    part = jnp.sum(e, axis=1, keepdims=True).reshape(1, -1)   # (1, TB), f32

    if nd == 1:
        o_ref[...] = jnp.maximum(part + margin, 0.0)
    else:
        # D-tiled: accumulate per-row partial sums in the resident output
        # block ('arbitrary' innermost axis); hinge only at the last D step.
        @pl.when(j == 0)
        def _():
            o_ref[...] = part

        @pl.when(jnp.logical_and(j > 0, j < nd - 1))
        def _():
            o_ref[...] += part

        @pl.when(j == nd - 1)
        def _():
            o_ref[...] = jnp.maximum(o_ref[...] + part + margin, 0.0)


def triplet_loss_ip(anchor, positive, negative, margin, average=True, *,
                    tile_sizes=None):
    """Pallas implementation of TripletLossIP.forward.

    anchor/positive/negative: (B, D).  Returns a scalar (average=True) or a
    (B,) vector (average=False), always float32.
    `tile_sizes=(TB, TD)` overrides the auto tile choice (testing only).
    """
    B, D = anchor.shape
    itemsize = anchor.dtype.itemsize
    vmem_limit, budget = _vmem_budget()
    TB, TD = tile_sizes if tile_sizes is not None else _pick_tiles(B, D, itemsize, budget)

    nb = pl.cdiv(B, TB)
    nd = pl.cdiv(D, TD)
    d_ragged = (D % TD) != 0
    B_out = nb * TB                       # output padded to whole tiles; sliced below

    kernel = functools.partial(_triplet_kernel, margin=float(margin),
                               d_size=D, td=TD, nd=nd, d_ragged=d_ragged)
    in_spec = pl.BlockSpec((TB, TD), lambda i, j: (i, j))

    out = pl.pallas_call(
        kernel,
        out_shape=jax.ShapeDtypeStruct((1, B_out), jnp.float32),
        grid=(nb, nd),
        in_specs=[in_spec, in_spec, in_spec],
        out_specs=pl.BlockSpec((1, TB), lambda i, j: (0, i)),
        compiler_params=pltpu.CompilerParams(
            dimension_semantics=("parallel", "arbitrary"),
            vmem_limit_bytes=vmem_limit),
        cost_estimate=pl.CostEstimate(
            flops=7 * B * D, transcendentals=0,
            bytes_accessed=3 * B * D * itemsize + B_out * 4),
    )(anchor, positive, negative)

    vec = out[0, :B]                      # drop lanes written from padded rows
    if average:
        # Trivial B-element XLA reduce; keeps the bandwidth-bound kernel
        # 'parallel' across both v7x TensorCores instead of an 'arbitrary'
        # single-core grid reduction.
        return jnp.mean(vec)
    return vec


def _reference(anchor, positive, negative, margin, average=True):
    a = anchor.astype(jnp.float32)
    p = positive.astype(jnp.float32)
    n = negative.astype(jnp.float32)
    d = jnp.sum((a - p) ** 2 - (a - n) ** 2, axis=1) + margin
    h = jnp.maximum(d, 0.0)
    return jnp.mean(h) if average else h


if __name__ == "__main__":
    key = jax.random.PRNGKey(0)
    margin = 0.5

    def check(B, D, dtype=jnp.float32, tiles=None, atol=1e-5, rtol=1e-5):
        ka, kp, kn = jax.random.split(jax.random.fold_in(key, B * 131 + D), 3)
        a = jax.random.normal(ka, (B, D), dtype=jnp.float32).astype(dtype)
        p = jax.random.normal(kp, (B, D), dtype=jnp.float32).astype(dtype)
        n = jax.random.normal(kn, (B, D), dtype=jnp.float32).astype(dtype)

        got_m = jax.block_until_ready(
            triplet_loss_ip(a, p, n, margin, average=True, tile_sizes=tiles))
        ref_m = _reference(a, p, n, margin, average=True)
        assert jnp.allclose(got_m, ref_m, atol=atol, rtol=rtol), (B, D, got_m, ref_m)

        got_v = jax.block_until_ready(
            triplet_loss_ip(a, p, n, margin, average=False, tile_sizes=tiles))
        ref_v = _reference(a, p, n, margin, average=False)
        assert jnp.allclose(got_v, ref_v, atol=atol, rtol=rtol), (B, D)

    # Single tile, exact shapes.
    check(8, 32)
    # Single tile, B not a multiple of 8 (ragged batch rows in the one block).
    check(12, 32)
    # Forced small tiles: ragged batch blocks + ragged D blocks + D-axis
    # accumulation path (exercises the multi-tile kernel on small data).
    check(200, 160, tiles=(128, 128), atol=1e-4, rtol=1e-4)
    # bf16 inputs: f32 upcast path + itemsize-aware tiling.
    check(12, 32, dtype=jnp.bfloat16, atol=1e-3, rtol=1e-3)

    print("KERNEL_OK")
</pallas_src>

<mosaic_0001>
module attributes {stable_mosaic.version = 11 : i64} {
  func.func @_triplet_kernel(%arg0: i32, %arg1: i32, %arg2: memref<8x32xf32, #tpu.memory_space<vmem>>, %arg3: memref<8x32xf32, #tpu.memory_space<vmem>>, %arg4: memref<8x32xf32, #tpu.memory_space<vmem>>, %arg5: memref<1x8xf32, #tpu.memory_space<vmem>>) attributes {dimension_semantics = [#tpu.dimension_semantics<parallel>, #tpu.dimension_semantics<arbitrary>], iteration_bounds = array<i64: 1, 1>, scalar_prefetch = 0 : i64, scratch_operands = 0 : i64, tpu.core_type = #tpu.core_type<tc>, window_params = [{transform_indices = @transform_0, window_bounds = array<i64: 8, 32>}, {transform_indices = @transform_1, window_bounds = array<i64: 8, 32>}, {transform_indices = @transform_2, window_bounds = array<i64: 8, 32>}, {transform_indices = @transform_3, window_bounds = array<i64: 1, 8>}]} {
    %c0 = arith.constant 0 : index
    %c0_0 = arith.constant 0 : index
    %0 = vector.load %arg2[%c0, %c0_0] : memref<8x32xf32, #tpu.memory_space<vmem>>, vector<8x32xf32>
    %c0_1 = arith.constant 0 : index
    %c0_2 = arith.constant 0 : index
    %1 = vector.load %arg3[%c0_1, %c0_2] : memref<8x32xf32, #tpu.memory_space<vmem>>, vector<8x32xf32>
    %c0_3 = arith.constant 0 : index
    %c0_4 = arith.constant 0 : index
    %2 = vector.load %arg4[%c0_3, %c0_4] : memref<8x32xf32, #tpu.memory_space<vmem>>, vector<8x32xf32>
    %3 = arith.subf %0, %1 : vector<8x32xf32>
    %4 = arith.subf %0, %2 : vector<8x32xf32>
    %5 = arith.mulf %3, %3 : vector<8x32xf32>
    %6 = arith.mulf %4, %4 : vector<8x32xf32>
    %7 = arith.subf %5, %6 : vector<8x32xf32>
    %cst = arith.constant dense<0.000000e+00> : vector<8xf32>
    %8 = vector.multi_reduction <add>, %7, %cst [1] : vector<8x32xf32> to vector<8xf32>
    %9 = vector.shape_cast %8 : vector<8xf32> to vector<8x1xf32>
    %10 = vector.shape_cast %9 : vector<8x1xf32> to vector<1x8xf32>
    %cst_5 = arith.constant 5.000000e-01 : f32
    %11 = vector.broadcast %cst_5 : f32 to vector<1x8xf32>
    %12 = arith.addf %10, %11 : vector<1x8xf32>
    %cst_6 = arith.constant 0.000000e+00 : f32
    %13 = vector.broadcast %cst_6 : f32 to vector<1x8xf32>
    %14 = arith.maximumf %12, %13 : vector<1x8xf32>
    %c0_7 = arith.constant 0 : index
    %c0_8 = arith.constant 0 : index
    %15 = vector.load %arg5[%c0_7, %c0_8] : memref<1x8xf32, #tpu.memory_space<vmem>>, vector<1x8xf32>
    tpu.vector_store %arg5[%c0_7, %c0_8], %14 {strides = array<i32>} : memref<1x8xf32, #tpu.memory_space<vmem>>, vector<1x8xf32>,
    return
  }
  func.func @transform_0(%arg0: i32, %arg1: i32) -> (i32, i32) {
    %c0_i32 = arith.constant 0 : i32
    return %arg0, %arg1 : i32, i32
  }
  func.func @transform_1(%arg0: i32, %arg1: i32) -> (i32, i32) {
    %c0_i32 = arith.constant 0 : i32
    return %arg0, %arg1 : i32, i32
  }
  func.func @transform_2(%arg0: i32, %arg1: i32) -> (i32, i32) {
    %c0_i32 = arith.constant 0 : i32
    return %arg0, %arg1 : i32, i32
  }
  func.func @transform_3(%arg0: i32, %arg1: i32) -> (i32, i32) {
    %c0_i32 = arith.constant 0 : i32
    %c0_i32_0 = arith.constant 0 : i32
    return %c0_i32, %arg0 : i32, i32
  }
}

</mosaic_0001>

<llo_original>
// kernel: tpu_custom_call.1
$region0: #{tpu_custom_call.1}
  #allocation0 [shape = 'u32[]', space=smem, size = 0x4, offset = 0x4, fixed_abs, tag = 'smem constant byte address 0x4 - core index']
  #allocation1 [shape = 'u32[144,128]{1,0:T(1,128)}', space=vmem, size = 0x12000, scoped, tag = 'internal scratch']
  %s0 = inlined_call_operand.hbm [shape: f32[8,32], index: 0, kind: input, shape index: {}]
  %s1 = inlined_call_operand.hbm [shape: f32[8,32], index: 1, kind: input, shape index: {}]
  %s2 = inlined_call_operand.hbm [shape: f32[8,32], index: 2, kind: input, shape index: {}]
  %s3 = inlined_call_operand.hbm [shape: f32[1,8], index: 3, kind: output, shape index: {}]
  %s4 = sld [smem:[#allocation0]]
  $region34: #{tpu_custom_call.1} parent=0
    _
  %s6 = ssub.s32 1, %s4
  %s7 = scalar_select 0, %s6, %s4
  $region1: #{tpu_custom_call.1} parent=0
    #allocation2 [shape = 'u8[4096]{0}', space=vmem, size = 0x1000, scoped, tag = 'input window, operand 0, single buffered']
    #allocation3 [shape = 's32[1]{0}', space=sflag, size = 0x4, scoped, tag = 'scoped memory for tpu_custom_call.1']
    #allocation4 [shape = 's32[1]{0}', space=sflag, size = 0x4, scoped, tag = 'scoped memory for tpu_custom_call.1']
    #allocation5 [shape = 'u8[4096]{0}', space=vmem, size = 0x1000, scoped, tag = 'input window, operand 1, single buffered']
    #allocation6 [shape = 's32[1]{0}', space=sflag, size = 0x4, scoped, tag = 'scoped memory for tpu_custom_call.1']
    #allocation7 [shape = 'u8[4096]{0}', space=vmem, size = 0x1000, scoped, tag = 'input window, operand 2, single buffered']
    #allocation8 [shape = 'u8[512]{0}', space=vmem, size = 0x400, scoped, tag = 'output window, operand 0, single buffered']
    %8 = vsyncpa [#allocation3], 0
    %9 = vsyncpa [#allocation6], 0
    %10 = vsyncpa [#allocation4], 0
    // Predicated region
    $region2: #{tpu_custom_call.1} parent=1 // pred_check
      _
    $region3: #{tpu_custom_call.1} parent=1 // pred_check_branch
      %12 = sbr.rel (0) target = $region5
    $region4: #{tpu_custom_call.1} parent=1 // pred_region
      %s14 = ssub.s32 128, 128
      %15 = vsyncadd [#allocation3], %s14
      %s17 = sshll.u32 [#allocation2], 4
      %s18 = int_to_ptr.vmem [resolvable:$true] %s17
      %20 = dma.hbm_to_vmem [thread:$0]  %s0, 128, %s18, [#allocation3]
    $region5: #{tpu_custom_call.1} parent=1 // pred_fallthru
      _
    // Predicated region
    $region6: #{tpu_custom_call.1} parent=1 // pred_check
      _
    $region7: #{tpu_custom_call.1} parent=1 // pred_check_branch
      %22 = sbr.rel (0) target = $region9
    $region8: #{tpu_custom_call.1} parent=1 // pred_region
      %s24 = ssub.s32 128, 128
      %25 = vsyncadd [#allocation6], %s24
      %s27 = sshll.u32 [#allocation5], 4
      %s28 = int_to_ptr.vmem [resolvable:$true] %s27
      %30 = dma.hbm_to_vmem [thread:$0]  %s1, 128, %s28, [#allocation6]
    $region9: #{tpu_custom_call.1} parent=1 // pred_fallthru
      _
    // Predicated region
    $region10: #{tpu_custom_call.1} parent=1 // pred_check
      _
    $region11: #{tpu_custom_call.1} parent=1 // pred_check_branch
      %32 = sbr.rel (0) target = $region13
    $region12: #{tpu_custom_call.1} parent=1 // pred_region
      %s34 = ssub.s32 128, 128
      %35 = vsyncadd [#allocation6], %s34
      %s37 = sshll.u32 [#allocation7], 4
      %s38 = int_to_ptr.vmem [resolvable:$true] %s37
      %40 = dma.hbm_to_vmem [thread:$0]  %s2, 128, %s38, [#allocation6]
    $region13: #{tpu_custom_call.1} parent=1 // pred_fallthru
      _
    // Predicated region
    $region14: #{tpu_custom_call.1} parent=1 // pred_check
      _
    $region15: #{tpu_custom_call.1} parent=1 // pred_check_branch
      %42 = sbr.rel (0) target = $region17
    $region16: #{tpu_custom_call.1} parent=1 // pred_region
      %43 = dma.done [#allocation3], 128
    $region17: #{tpu_custom_call.1} parent=1 // pred_fallthru
      _
    // Predicated region
    $region18: #{tpu_custom_call.1} parent=1 // pred_check
      _
    $region19: #{tpu_custom_call.1} parent=1 // pred_check_branch
      %45 = sbr.rel (0) target = $region21
    $region20: #{tpu_custom_call.1} parent=1 // pred_region
      %46 = dma.done [#allocation6], 128
    $region21: #{tpu_custom_call.1} parent=1 // pred_fallthru
      _
    // Predicated region
    $region22: #{tpu_custom_call.1} parent=1 // pred_check
      _
    $region23: #{tpu_custom_call.1} parent=1 // pred_check_branch
      %48 = sbr.rel (0) target = $region25
    $region24: #{tpu_custom_call.1} parent=1 // pred_region
      %49 = dma.done [#allocation6], 128
    $region25: #{tpu_custom_call.1} parent=1 // pred_fallthru
      _
    %v50 = vld [vmem:[#allocation2] sm:$0xff]
    %v51 = vld [vmem:[#allocation5] sm:$0xff]
    %v52 = vld [vmem:[#allocation7] sm:$0xff]
    %v53 = vsub.f32 %v50, %v51
    %v54 = vsub.f32 %v50, %v52
    %v55 = vmul.f32 %v53, %v53
    %v56 = vmul.f32 %v54, %v54
    %v57 = vsub.f32 %v55, %v56
    %vm58 = vcmask 261120
    %v59 = vsel %vm58, %v57, 0.0
    %60 = vadd.xlane.f32.xlu0 %v59
    %v61 = vpop.xlane.xlu0 %60
    %v62 = vadd.f32 %v61, 0.5
    %v63 = vmax.f32 %v62, 0.0
    %v65 = vlaneseq
    %v66 = vand.u32 %v65, 127
    %v67 = vlaneseq
    %v68 = vshrl.u32 %v67, 7
    %v69 = vsub.s32 %v66, %v68
    %v70 = vrot.slane %v63, %v69
    %vm72 = vcmask 57344
    %73 = vst.msk [vmem:[#allocation8] sm:$0x1] %vm72, %v70
    // Predicated region
    $region26: #{tpu_custom_call.1} parent=1 // pred_check
      _
    $region27: #{tpu_custom_call.1} parent=1 // pred_check_branch
      %75 = sbr.rel (0) target = $region29
    $region28: #{tpu_custom_call.1} parent=1 // pred_region
      %s77 = ssub.s32 16, 16
      %78 = vsyncadd [#allocation4], %s77
      %s80 = sshll.u32 [#allocation8], 4
      %s81 = int_to_ptr.vmem [resolvable:$true] %s80
      %83 = dma.vmem_to_hbm [thread:$0]  %s81, 16, %s3, [#allocation4]
    $region29: #{tpu_custom_call.1} parent=1 // pred_fallthru
      _
    // Predicated region
    $region30: #{tpu_custom_call.1} parent=1 // pred_check
      _
    $region31: #{tpu_custom_call.1} parent=1 // pred_check_branch
      %85 = sbr.rel (0) target = $region33
    $region32: #{tpu_custom_call.1} parent=1 // pred_region
      %86 = dma.done [#allocation4], 16
    $region33: #{tpu_custom_call.1} parent=1 // pred_fallthru
      _
    %87 = vsyncpa [#allocation3], 1
    %88 = vsyncpa [#allocation6], 1
    %89 = vsyncpa [#allocation4], 1

</llo_original>
